<compile_context>
chip_gen: v7x
topology: tpu7x:2x2x1
jax: 0.10.0
libtpu: 0.0.40
codegen_flags: <defaults>
</compile_context>

<pallas_src>
import functools

import jax
import jax.numpy as jnp
import numpy as np
from jax.experimental import pallas as pl
from jax.experimental.pallas import tpu as pltpu


# --------------------------------------------------------------------------
# Kernel: fused 3-layer MLP + packed, lane-dense [mean | log_std | 0-pad] head
# --------------------------------------------------------------------------
def _actor_kernel(action_dim, log_std_min, log_std_max,
                  s_ref, w1_ref, b1_ref, w2_ref, b2_ref, w3_ref, b3_ref,
                  wh_ref, bh_ref, o_ref):
    """relu(fc1) -> relu(fc2) -> relu(fc3) -> [mean | clamp(log_std) | pad]."""

    def dense(x_bf16, w_ref, b_ref):
        # bf16 x bf16 matmul, f32 accumulation + f32 bias.
        return jnp.dot(x_bf16, w_ref[...],
                       preferred_element_type=jnp.float32) + b_ref[...]

    # Keep inter-layer activations in bf16 (cast once after each ReLU).
    h = jnp.maximum(dense(s_ref[...].astype(jnp.bfloat16), w1_ref, b1_ref),
                    0.0).astype(jnp.bfloat16)
    h = jnp.maximum(dense(h, w2_ref, b2_ref), 0.0).astype(jnp.bfloat16)
    h = jnp.maximum(dense(h, w3_ref, b3_ref), 0.0).astype(jnp.bfloat16)

    out = dense(h, wh_ref, bh_ref)  # (TB, 128) f32

    # Columns [:action_dim] = mean (untouched); the rest (log_std + zero pad)
    # get the clamp.  Padded columns are sliced off in the wrapper.
    col = jax.lax.broadcasted_iota(jnp.int32, out.shape, 1)
    clamped = jnp.clip(out, log_std_min, log_std_max)
    o_ref[...] = jnp.where(col < action_dim, out, clamped)


# --------------------------------------------------------------------------
# Wrapper
# --------------------------------------------------------------------------
def _round_up(x, m):
    return (x + m - 1) // m * m


@functools.partial(jax.jit, static_argnames=("state_dim", "action_dim",
                                             "log_std_min", "log_std_max"))
def actor_forward(params, state, *, state_dim, action_dim,
                  log_std_min=-2.0, log_std_max=2.0):
    """Returns (mean, log_std), matching ActorNetwork.forward()."""
    B = state.shape[0]

    # Replicates the PyTorch dimension-mismatch handling (truncate / zero-pad).
    if state.shape[1] > state_dim:
        state = state[:, :state_dim]
    elif state.shape[1] < state_dim:
        state = jnp.pad(state, ((0, 0), (0, state_dim - state.shape[1])))

    # Sublane-aligned batch tiling; weights stay resident across the batch grid.
    TB = min(_round_up(B, 8), 512)
    if B >= 16:
        # Ensure >= 2 grid steps so v7x's second TensorCore has work to steal.
        TB = min(TB, _round_up((B + 1) // 2, 8))
    Bp = _round_up(B, TB)
    if Bp != B:
        state = jnp.pad(state, ((0, Bp - B), (0, 0)))

    w1, b1 = params["w1"], params["b1"]
    w2, b2 = params["w2"], params["b2"]
    w3, b3 = params["w3"], params["b3"]
    wh, bh = params["wh"], params["bh"]          # head already padded to 128 lanes
    hidden = w1.shape[1]
    headp = wh.shape[1]                          # lane-dense head width (>=128)
    out2 = 2 * action_dim

    kernel = functools.partial(_actor_kernel, action_dim,
                               float(log_std_min), float(log_std_max))

    def resident(arr):
        # Full-array block, constant index_map -> loaded once, resident in VMEM.
        shape = arr.shape
        return pl.BlockSpec(shape, lambda i: (0,) * len(shape))

    # Advisory cost estimate (launch/DMA-latency bound at small B).
    weight_bytes = sum(int(np.prod(p.shape)) * p.dtype.itemsize
                       for p in (w1, w2, w3, wh))
    bias_bytes = sum(int(np.prod(p.shape)) * p.dtype.itemsize
                     for p in (b1, b2, b3, bh))
    flops = 2 * Bp * (state_dim * hidden + 2 * hidden * hidden + hidden * headp)
    bytes_accessed = (weight_bytes + bias_bytes
                      + Bp * state_dim * 4 + Bp * headp * 4)
    cost = pl.CostEstimate(flops=flops, transcendentals=0,
                           bytes_accessed=bytes_accessed)

    # Explicit scoped-VMEM budget: double-buffered blocks + activation headroom,
    # generous but well under v7x's 32 MiB default scoped limit at these sizes.
    io_block_bytes = TB * state_dim * 4 + TB * headp * 4
    vmem_est = 2 * (weight_bytes + bias_bytes + io_block_bytes) \
        + 4 * TB * hidden * 4
    vmem_limit = int(min(max(2 * vmem_est, 8 << 20), 32 << 20))

    packed = pl.pallas_call(
        kernel,
        out_shape=jax.ShapeDtypeStruct((Bp, headp), jnp.float32),
        grid_spec=pltpu.PrefetchScalarGridSpec(
            num_scalar_prefetch=0,
            grid=(Bp // TB,),
            in_specs=[
                pl.BlockSpec((TB, state_dim), lambda i: (i, 0)),
                resident(w1), resident(b1),
                resident(w2), resident(b2),
                resident(w3), resident(b3),
                resident(wh), resident(bh),
            ],
            out_specs=pl.BlockSpec((TB, headp), lambda i: (i, 0)),
        ),
        compiler_params=pltpu.CompilerParams(
            dimension_semantics=("parallel",),
            vmem_limit_bytes=vmem_limit),
        cost_estimate=cost,
    )(state, w1, b1, w2, b2, w3, b3, wh, bh)

    mean = packed[:B, :action_dim]
    log_std = packed[:B, action_dim:out2]
    return mean, log_std


# --------------------------------------------------------------------------
# Pure-JAX reference (identical math, no Pallas) for the correctness check
# --------------------------------------------------------------------------
def actor_forward_ref(params, state, *, state_dim, action_dim,
                      log_std_min=-2.0, log_std_max=2.0):
    if state.shape[1] > state_dim:
        state = state[:, :state_dim]
    elif state.shape[1] < state_dim:
        state = jnp.pad(state, ((0, 0), (0, state_dim - state.shape[1])))

    def dense(x, w, b):
        return jnp.dot(x.astype(w.dtype), w,
                       preferred_element_type=jnp.float32) + b

    h = jnp.maximum(dense(state, params["w1"], params["b1"]), 0.0)
    h = jnp.maximum(dense(h, params["w2"], params["b2"]), 0.0)
    h = jnp.maximum(dense(h, params["w3"], params["b3"]), 0.0)
    out = dense(h, params["wh"], params["bh"])
    mean = out[:, :action_dim]
    log_std = jnp.clip(out[:, action_dim:2 * action_dim],
                       log_std_min, log_std_max)
    return mean, log_std


# --------------------------------------------------------------------------
# Deterministic parameter construction
# --------------------------------------------------------------------------
def make_actor_params(key, state_dim, action_dim, hidden_dim):
    ks = jax.random.split(key, 5)

    def lin(k, din, dout, w_scale=0.1, b_scale=0.05):
        kw, kb = jax.random.split(k)
        w = (w_scale * jax.random.normal(kw, (din, dout), jnp.float32)
             ).astype(jnp.bfloat16)                     # bf16 weights for the MXU
        b = b_scale * jax.random.normal(kb, (1, dout), jnp.float32)
        return w, b

    p = {}
    p["w1"], p["b1"] = lin(ks[0], state_dim, hidden_dim)
    p["w2"], p["b2"] = lin(ks[1], hidden_dim, hidden_dim)
    p["w3"], p["b3"] = lin(ks[2], hidden_dim, hidden_dim)

    # mean and log_std heads packed column-wise, then zero-padded to a full
    # 128-lane output slab: [mean | log_std | zeros].
    wm, bm = lin(ks[3], hidden_dim, action_dim)
    ws, bs = lin(ks[4], hidden_dim, action_dim)
    out2 = 2 * action_dim
    headp = _round_up(max(out2, 1), 128)
    wh = jnp.concatenate([wm, ws], axis=1)
    bh = jnp.concatenate([bm, bs], axis=1)
    p["wh"] = jnp.pad(wh, ((0, 0), (0, headp - out2))).astype(jnp.bfloat16)
    p["bh"] = jnp.pad(bh, ((0, 0), (0, headp - out2)))
    return p


# --------------------------------------------------------------------------
if __name__ == "__main__":
    B = 8              # batch (any B works via padding)
    STATE_DIM = 16     # state_dim
    ACTION_DIM = 1     # action_dim
    HIDDEN_DIM = 256   # hidden_dim (lane/MXU-dense: multiple of 256)
    LOG_STD_MIN, LOG_STD_MAX = -2.0, 2.0

    key = jax.random.PRNGKey(0)
    k_p, k_s = jax.random.split(key)
    params = make_actor_params(k_p, STATE_DIM, ACTION_DIM, HIDDEN_DIM)
    state = jax.random.normal(k_s, (B, STATE_DIM), jnp.float32)

    mean, log_std = actor_forward(params, state,
                                  state_dim=STATE_DIM, action_dim=ACTION_DIM,
                                  log_std_min=LOG_STD_MIN, log_std_max=LOG_STD_MAX)
    jax.block_until_ready((mean, log_std))

    # Correctness check vs. pure-JAX reference (same bf16-matmul / f32-acc math).
    mean_ref, log_std_ref = actor_forward_ref(
        params, state, state_dim=STATE_DIM, action_dim=ACTION_DIM,
        log_std_min=LOG_STD_MIN, log_std_max=LOG_STD_MAX)
    np.testing.assert_allclose(np.asarray(mean), np.asarray(mean_ref),
                               rtol=1e-3, atol=1e-3)
    np.testing.assert_allclose(np.asarray(log_std), np.asarray(log_std_ref),
                               rtol=1e-3, atol=1e-3)

    assert mean.shape == (B, ACTION_DIM) and log_std.shape == (B, ACTION_DIM)
    assert float(jnp.min(log_std)) >= LOG_STD_MIN - 1e-6
    assert float(jnp.max(log_std)) <= LOG_STD_MAX + 1e-6

    # Also exercise a larger batch path (multi-step grid, TB split for 2 TCs).
    state_big = jax.random.normal(jax.random.PRNGKey(1), (200, STATE_DIM),
                                  jnp.float32)
    mb, lb = actor_forward(params, state_big,
                           state_dim=STATE_DIM, action_dim=ACTION_DIM,
                           log_std_min=LOG_STD_MIN, log_std_max=LOG_STD_MAX)
    mb_ref, lb_ref = actor_forward_ref(params, state_big,
                                       state_dim=STATE_DIM, action_dim=ACTION_DIM,
                                       log_std_min=LOG_STD_MIN,
                                       log_std_max=LOG_STD_MAX)
    np.testing.assert_allclose(np.asarray(mb), np.asarray(mb_ref),
                               rtol=1e-3, atol=1e-3)
    np.testing.assert_allclose(np.asarray(lb), np.asarray(lb_ref),
                               rtol=1e-3, atol=1e-3)

    # TODO(synk): ActorNetwork.sample() (rsample + tanh log-prob correction) is
    # outside forward(); fusing it here (pltpu.prng_seed/prng_random_bits + EUP
    # tanh/exp) would remove a second launch but is not part of forward().
    print("KERNEL_OK")
</pallas_src>

<mosaic_0001>
module attributes {stable_mosaic.version = 11 : i64} {
  func.func @_actor_kernel(%arg0: i32, %arg1: memref<8x16xf32, #tpu.memory_space<vmem>>, %arg2: memref<16x256xbf16, #tpu.memory_space<vmem>>, %arg3: memref<1x256xf32, #tpu.memory_space<vmem>>, %arg4: memref<256x256xbf16, #tpu.memory_space<vmem>>, %arg5: memref<1x256xf32, #tpu.memory_space<vmem>>, %arg6: memref<256x256xbf16, #tpu.memory_space<vmem>>, %arg7: memref<1x256xf32, #tpu.memory_space<vmem>>, %arg8: memref<256x128xbf16, #tpu.memory_space<vmem>>, %arg9: memref<1x128xf32, #tpu.memory_space<vmem>>, %arg10: memref<8x128xf32, #tpu.memory_space<vmem>>) attributes {dimension_semantics = [#tpu.dimension_semantics<parallel>], iteration_bounds = array<i64: 1>, scalar_prefetch = 0 : i64, scratch_operands = 0 : i64, tpu.core_type = #tpu.core_type<tc>, window_params = [{transform_indices = @transform_0, window_bounds = array<i64: 8, 16>}, {pipeline_mode = #tpu.pipeline_mode<synchronous>, transform_indices = @transform_1, window_bounds = array<i64: 16, 256>}, {pipeline_mode = #tpu.pipeline_mode<synchronous>, transform_indices = @transform_2, window_bounds = array<i64: 1, 256>}, {pipeline_mode = #tpu.pipeline_mode<synchronous>, transform_indices = @transform_3, window_bounds = array<i64: 256, 256>}, {pipeline_mode = #tpu.pipeline_mode<synchronous>, transform_indices = @transform_4, window_bounds = array<i64: 1, 256>}, {pipeline_mode = #tpu.pipeline_mode<synchronous>, transform_indices = @transform_5, window_bounds = array<i64: 256, 256>}, {pipeline_mode = #tpu.pipeline_mode<synchronous>, transform_indices = @transform_6, window_bounds = array<i64: 1, 256>}, {pipeline_mode = #tpu.pipeline_mode<synchronous>, transform_indices = @transform_7, window_bounds = array<i64: 256, 128>}, {pipeline_mode = #tpu.pipeline_mode<synchronous>, transform_indices = @transform_8, window_bounds = array<i64: 1, 128>}, {transform_indices = @transform_9, window_bounds = array<i64: 8, 128>}]} {
    %c0 = arith.constant 0 : index
    %c0_0 = arith.constant 0 : index
    %0 = vector.load %arg1[%c0, %c0_0] : memref<8x16xf32, #tpu.memory_space<vmem>>, vector<8x16xf32>
    %1 = arith.truncf %0 : vector<8x16xf32> to vector<8x16xbf16>
    %c0_1 = arith.constant 0 : index
    %c0_2 = arith.constant 0 : index
    %2 = vector.load %arg2[%c0_1, %c0_2] : memref<16x256xbf16, #tpu.memory_space<vmem>>, vector<16x256xbf16>
    %cst = arith.constant dense<0.000000e+00> : vector<8x256xf32>
    %3 = tpu.matmul %1, %2, %cst {dimension_numbers = #tpu.dot_dimension_numbers<[1], [0], [0], [1], [0, 0, 1, 1], [], []>} : vector<8x16xbf16>, vector<16x256xbf16>, vector<8x256xf32> -> vector<8x256xf32>
    %c0_3 = arith.constant 0 : index
    %c0_4 = arith.constant 0 : index
    %4 = vector.load %arg3[%c0_3, %c0_4] : memref<1x256xf32, #tpu.memory_space<vmem>>, vector<1x256xf32>
    %5 = vector.broadcast %4 : vector<1x256xf32> to vector<8x256xf32>
    %6 = arith.addf %3, %5 : vector<8x256xf32>
    %cst_5 = arith.constant 0.000000e+00 : f32
    %7 = vector.broadcast %cst_5 : f32 to vector<8x256xf32>
    %8 = arith.maximumf %6, %7 : vector<8x256xf32>
    %9 = arith.truncf %8 : vector<8x256xf32> to vector<8x256xbf16>
    %c0_6 = arith.constant 0 : index
    %c0_7 = arith.constant 0 : index
    %10 = vector.load %arg4[%c0_6, %c0_7] : memref<256x256xbf16, #tpu.memory_space<vmem>>, vector<256x256xbf16>
    %cst_8 = arith.constant dense<0.000000e+00> : vector<8x256xf32>
    %11 = tpu.matmul %9, %10, %cst_8 {dimension_numbers = #tpu.dot_dimension_numbers<[1], [0], [0], [1], [0, 0, 1, 1], [], []>} : vector<8x256xbf16>, vector<256x256xbf16>, vector<8x256xf32> -> vector<8x256xf32>
    %c0_9 = arith.constant 0 : index
    %c0_10 = arith.constant 0 : index
    %12 = vector.load %arg5[%c0_9, %c0_10] : memref<1x256xf32, #tpu.memory_space<vmem>>, vector<1x256xf32>
    %13 = vector.broadcast %12 : vector<1x256xf32> to vector<8x256xf32>
    %14 = arith.addf %11, %13 : vector<8x256xf32>
    %cst_11 = arith.constant 0.000000e+00 : f32
    %15 = vector.broadcast %cst_11 : f32 to vector<8x256xf32>
    %16 = arith.maximumf %14, %15 : vector<8x256xf32>
    %17 = arith.truncf %16 : vector<8x256xf32> to vector<8x256xbf16>
    %c0_12 = arith.constant 0 : index
    %c0_13 = arith.constant 0 : index
    %18 = vector.load %arg6[%c0_12, %c0_13] : memref<256x256xbf16, #tpu.memory_space<vmem>>, vector<256x256xbf16>
    %cst_14 = arith.constant dense<0.000000e+00> : vector<8x256xf32>
    %19 = tpu.matmul %17, %18, %cst_14 {dimension_numbers = #tpu.dot_dimension_numbers<[1], [0], [0], [1], [0, 0, 1, 1], [], []>} : vector<8x256xbf16>, vector<256x256xbf16>, vector<8x256xf32> -> vector<8x256xf32>
    %c0_15 = arith.constant 0 : index
    %c0_16 = arith.constant 0 : index
    %20 = vector.load %arg7[%c0_15, %c0_16] : memref<1x256xf32, #tpu.memory_space<vmem>>, vector<1x256xf32>
    %21 = vector.broadcast %20 : vector<1x256xf32> to vector<8x256xf32>
    %22 = arith.addf %19, %21 : vector<8x256xf32>
    %cst_17 = arith.constant 0.000000e+00 : f32
    %23 = vector.broadcast %cst_17 : f32 to vector<8x256xf32>
    %24 = arith.maximumf %22, %23 : vector<8x256xf32>
    %25 = arith.truncf %24 : vector<8x256xf32> to vector<8x256xbf16>
    %c0_18 = arith.constant 0 : index
    %c0_19 = arith.constant 0 : index
    %26 = vector.load %arg8[%c0_18, %c0_19] : memref<256x128xbf16, #tpu.memory_space<vmem>>, vector<256x128xbf16>
    %cst_20 = arith.constant dense<0.000000e+00> : vector<8x128xf32>
    %27 = tpu.matmul %25, %26, %cst_20 {dimension_numbers = #tpu.dot_dimension_numbers<[1], [0], [0], [1], [0, 0, 1, 1], [], []>} : vector<8x256xbf16>, vector<256x128xbf16>, vector<8x128xf32> -> vector<8x128xf32>
    %c0_21 = arith.constant 0 : index
    %c0_22 = arith.constant 0 : index
    %28 = vector.load %arg9[%c0_21, %c0_22] : memref<1x128xf32, #tpu.memory_space<vmem>>, vector<1x128xf32>
    %29 = vector.broadcast %28 : vector<1x128xf32> to vector<8x128xf32>
    %30 = arith.addf %27, %29 : vector<8x128xf32>
    %31 = tpu.iota {dimensions = array<i32: 1>} : vector<8x128xi32>
    %cst_23 = arith.constant -2.000000e+00 : f32
    %cst_24 = arith.constant 2.000000e+00 : f32
    %32 = vector.broadcast %cst_23 : f32 to vector<8x128xf32>
    %33 = arith.maximumf %32, %30 : vector<8x128xf32>
    %34 = vector.broadcast %cst_24 : f32 to vector<8x128xf32>
    %35 = arith.minimumf %34, %33 : vector<8x128xf32>
    %c1_i32 = arith.constant 1 : i32
    %36 = vector.broadcast %c1_i32 : i32 to vector<8x128xi32>
    %37 = arith.cmpi slt, %31, %36 : vector<8x128xi32>
    %38 = arith.select %37, %30, %35 : vector<8x128xi1>, vector<8x128xf32>
    %c0_25 = arith.constant 0 : index
    %c0_26 = arith.constant 0 : index
    %39 = vector.load %arg10[%c0_25, %c0_26] : memref<8x128xf32, #tpu.memory_space<vmem>>, vector<8x128xf32>
    tpu.vector_store %arg10[%c0_25, %c0_26], %38 {strides = array<i32>} : memref<8x128xf32, #tpu.memory_space<vmem>>, vector<8x128xf32>,
    return
  }
  func.func @transform_0(%arg0: i32) -> (i32, i32) {
    %c0_i32 = arith.constant 0 : i32
    %c0_i32_0 = arith.constant 0 : i32
    return %arg0, %c0_i32 : i32, i32
  }
  func.func @transform_1(%arg0: i32) -> (i32, i32) {
    %c0_i32 = arith.constant 0 : i32
    %c0_i32_0 = arith.constant 0 : i32
    %c0_i32_1 = arith.constant 0 : i32
    return %c0_i32, %c0_i32_0 : i32, i32
  }
  func.func @transform_2(%arg0: i32) -> (i32, i32) {
    %c0_i32 = arith.constant 0 : i32
    %c0_i32_0 = arith.constant 0 : i32
    %c0_i32_1 = arith.constant 0 : i32
    return %c0_i32, %c0_i32_0 : i32, i32
  }
  func.func @transform_3(%arg0: i32) -> (i32, i32) {
    %c0_i32 = arith.constant 0 : i32
    %c0_i32_0 = arith.constant 0 : i32
    %c0_i32_1 = arith.constant 0 : i32
    return %c0_i32, %c0_i32_0 : i32, i32
  }
  func.func @transform_4(%arg0: i32) -> (i32, i32) {
    %c0_i32 = arith.constant 0 : i32
    %c0_i32_0 = arith.constant 0 : i32
    %c0_i32_1 = arith.constant 0 : i32
    return %c0_i32, %c0_i32_0 : i32, i32
  }
  func.func @transform_5(%arg0: i32) -> (i32, i32) {
    %c0_i32 = arith.constant 0 : i32
    %c0_i32_0 = arith.constant 0 : i32
    %c0_i32_1 = arith.constant 0 : i32
    return %c0_i32, %c0_i32_0 : i32, i32
  }
  func.func @transform_6(%arg0: i32) -> (i32, i32) {
    %c0_i32 = arith.constant 0 : i32
    %c0_i32_0 = arith.constant 0 : i32
    %c0_i32_1 = arith.constant 0 : i32
    return %c0_i32, %c0_i32_0 : i32, i32
  }
  func.func @transform_7(%arg0: i32) -> (i32, i32) {
    %c0_i32 = arith.constant 0 : i32
    %c0_i32_0 = arith.constant 0 : i32
    %c0_i32_1 = arith.constant 0 : i32
    return %c0_i32, %c0_i32_0 : i32, i32
  }
  func.func @transform_8(%arg0: i32) -> (i32, i32) {
    %c0_i32 = arith.constant 0 : i32
    %c0_i32_0 = arith.constant 0 : i32
    %c0_i32_1 = arith.constant 0 : i32
    return %c0_i32, %c0_i32_0 : i32, i32
  }
  func.func @transform_9(%arg0: i32) -> (i32, i32) {
    %c0_i32 = arith.constant 0 : i32
    %c0_i32_0 = arith.constant 0 : i32
    return %arg0, %c0_i32 : i32, i32
  }
}

</mosaic_0001>

<llo_original>
// kernel: actor_forward.1
$region0: #{actor_forward.1}
  #allocation0 [shape = 'u32[]', space=smem, size = 0x4, offset = 0x4, fixed_abs, tag = 'smem constant byte address 0x4 - core index']
  #allocation1 [shape = 'u32[144,128]{1,0:T(1,128)}', space=vmem, size = 0x12000, scoped, tag = 'internal scratch']
  %s0 = inlined_call_operand.vmem [shape: f32[8,16], index: 0, kind: input, shape index: {}]
  %s1 = inlined_call_operand.hbm [shape: bf16[16,256], index: 1, kind: input, shape index: {}]
  %s2 = inlined_call_operand.hbm [shape: f32[1,256], index: 2, kind: input, shape index: {}]
  %s3 = inlined_call_operand.hbm [shape: bf16[256,256], index: 3, kind: input, shape index: {}]
  %s4 = inlined_call_operand.vmem [shape: f32[1,256], index: 4, kind: input, shape index: {}]
  %s5 = inlined_call_operand.hbm [shape: bf16[256,256], index: 5, kind: input, shape index: {}]
  %s6 = inlined_call_operand.vmem [shape: f32[1,256], index: 6, kind: input, shape index: {}]
  %s7 = inlined_call_operand.hbm [shape: bf16[256,128], index: 7, kind: input, shape index: {}]
  %s8 = inlined_call_operand.vmem [shape: f32[1,128], index: 8, kind: input, shape index: {}]
  %s9 = inlined_call_operand.vmem [shape: f32[8,128], index: 9, kind: output, shape index: {}]
  %s10 = sld [smem:[#allocation0]]
  $region66: #{actor_forward.1} parent=0
    _
  %s12 = ssub.s32 1, %s10
  %s13 = scalar_select 0, %s12, %s10
  $region1: #{actor_forward.1} parent=0
    #allocation2 [shape = 'u8[8192]{0}', space=vmem, size = 0x2000, scoped, tag = 'input window, operand 1, single buffered']
    #allocation3 [shape = 's32[1]{0}', space=sflag, size = 0x4, scoped, tag = 'scoped memory for actor_forward.1']
    #allocation4 [shape = 'u8[1024]{0}', space=vmem, size = 0x400, scoped, tag = 'input window, operand 2, single buffered']
    #allocation5 [shape = 's32[1]{0}', space=sflag, size = 0x4, scoped, tag = 'scoped memory for actor_forward.1']
    #allocation6 [shape = 'u8[131072]{0}', space=vmem, size = 0x20000, scoped, tag = 'input window, operand 3, single buffered']
    #allocation7 [shape = 'u8[131072]{0}', space=vmem, size = 0x20000, scoped, tag = 'input window, operand 5, single buffered']
    #allocation8 [shape = 's32[1]{0}', space=sflag, size = 0x4, scoped, tag = 'scoped memory for actor_forward.1']
    #allocation9 [shape = 'u8[65536]{0}', space=vmem, size = 0x10000, scoped, tag = 'input window, operand 7, single buffered']
    %14 = vsyncpa [#allocation3], 0
    %15 = vsyncpa [#allocation5], 0
    %16 = vsyncpa [#allocation8], 0
    // Predicated region
    $region2: #{actor_forward.1} parent=1 // pred_check
      _
    $region3: #{actor_forward.1} parent=1 // pred_check_branch
      %18 = sbr.rel (0) target = $region5
    $region4: #{actor_forward.1} parent=1 // pred_region
      _
    $region5: #{actor_forward.1} parent=1 // pred_fallthru
      _
    // Predicated region
    $region6: #{actor_forward.1} parent=1 // pred_check
      _
    $region7: #{actor_forward.1} parent=1 // pred_check_branch
      %20 = sbr.rel (0) target = $region9
    $region8: #{actor_forward.1} parent=1 // pred_region
      %s22 = ssub.s32 256, 256
      %23 = vsyncadd [#allocation3], %s22
      %s24 = sshll.u32 [#allocation2], 4
      %s25 = int_to_ptr.vmem [resolvable:$true] %s24
      %30 = dma.hbm_to_vmem [thread:$0]  %s1, 256, %s25, [#allocation3], 128, 128, 8
    $region9: #{actor_forward.1} parent=1 // pred_fallthru
      _
    // Predicated region
    $region10: #{actor_forward.1} parent=1 // pred_check
      _
    $region11: #{actor_forward.1} parent=1 // pred_check_branch
      %32 = sbr.rel (0) target = $region13
    $region12: #{actor_forward.1} parent=1 // pred_region
      %s34 = ssub.s32 32, 32
      %35 = vsyncadd [#allocation5], %s34
      %s37 = sshll.u32 [#allocation4], 4
      %s38 = int_to_ptr.vmem [resolvable:$true] %s37
      %40 = dma.hbm_to_vmem [thread:$0]  %s2, 32, %s38, [#allocation5]
    $region13: #{actor_forward.1} parent=1 // pred_fallthru
      _
    // Predicated region
    $region14: #{actor_forward.1} parent=1 // pred_check
      _
    $region15: #{actor_forward.1} parent=1 // pred_check_branch
      %42 = sbr.rel (0) target = $region17
    $region16: #{actor_forward.1} parent=1 // pred_region
      %s44 = ssub.s32 4096, 4096
      %45 = vsyncadd [#allocation5], %s44
      %s46 = sshll.u32 [#allocation6], 4
      %s47 = int_to_ptr.vmem [resolvable:$true] %s46
      %52 = dma.hbm_to_vmem [thread:$0]  %s3, 4096, %s47, [#allocation5], 128, 128, 8
    $region17: #{actor_forward.1} parent=1 // pred_fallthru
      _
    // Predicated region
    $region18: #{actor_forward.1} parent=1 // pred_check
      _
    $region19: #{actor_forward.1} parent=1 // pred_check_branch
      %54 = sbr.rel (0) target = $region21
    $region20: #{actor_forward.1} parent=1 // pred_region
      _
    $region21: #{actor_forward.1} parent=1 // pred_fallthru
      _
    // Predicated region
    $region22: #{actor_forward.1} parent=1 // pred_check
      _
    $region23: #{actor_forward.1} parent=1 // pred_check_branch
      %56 = sbr.rel (0) target = $region25
    $region24: #{actor_forward.1} parent=1 // pred_region
      %s58 = ssub.s32 4096, 4096
      %59 = vsyncadd [#allocation8], %s58
      %s60 = sshll.u32 [#allocation7], 4
      %s61 = int_to_ptr.vmem [resolvable:$true] %s60
      %66 = dma.hbm_to_vmem [thread:$0]  %s5, 4096, %s61, [#allocation8], 128, 128, 8
    $region25: #{actor_forward.1} parent=1 // pred_fallthru
      _
    // Predicated region
    $region26: #{actor_forward.1} parent=1 // pred_check
      _
    $region27: #{actor_forward.1} parent=1 // pred_check_branch
      %68 = sbr.rel (0) target = $region29
    $region28: #{actor_forward.1} parent=1 // pred_region
      _
    $region29: #{actor_forward.1} parent=1 // pred_fallthru
      _
    // Predicated region
    $region30: #{actor_forward.1} parent=1 // pred_check
      _
    $region31: #{actor_forward.1} parent=1 // pred_check_branch
      %70 = sbr.rel (0) target = $region33
    $region32: #{actor_forward.1} parent=1 // pred_region
      %s72 = ssub.s32 2048, 2048
      %73 = vsyncadd [#allocation8], %s72
      %s74 = sshll.u32 [#allocation9], 4
      %s75 = int_to_ptr.vmem [resolvable:$true] %s74
      %80 = dma.hbm_to_vmem [thread:$0]  %s7, 2048, %s75, [#allocation8], 64, 64, 4
    $region33: #{actor_forward.1} parent=1 // pred_fallthru
      _
    // Predicated region
    $region34: #{actor_forward.1} parent=1 // pred_check
      _
    $region35: #{actor_forward.1} parent=1 // pred_check_branch
      %82 = sbr.rel (0) target = $region37
    $region36: #{actor_forward.1} parent=1 // pred_region
      _
    $region37: #{actor_forward.1} parent=1 // pred_fallthru
      _
    // Predicated region
    $region38: #{actor_forward.1} parent=1 // pred_check
      _
    $region39: #{actor_forward.1} parent=1 // pred_check_branch
      %84 = sbr.rel (0) target = $region41
    $region40: #{actor_forward.1} parent=1 // pred_region
      %85 = dma.done [#allocation3], 256
    $region41: #{actor_forward.1} parent=1 // pred_fallthru
      _
    // Predicated region
    $region42: #{actor_forward.1} parent=1 // pred_check
      _
    $region43: #{actor_forward.1} parent=1 // pred_check_branch
      %87 = sbr.rel (0) target = $region45
    $region44: #{actor_forward.1} parent=1 // pred_region
      %88 = dma.done [#allocation5], 32
    $region45: #{actor_forward.1} parent=1 // pred_fallthru
      _
    // Predicated region
    $region46: #{actor_forward.1} parent=1 // pred_check
      _
    $region47: #{actor_forward.1} parent=1 // pred_check_branch
      %90 = sbr.rel (0) target = $region49
    $region48: #{actor_forward.1} parent=1 // pred_region
      %91 = dma.done [#allocation5], 4096
    $region49: #{actor_forward.1} parent=1 // pred_fallthru
      _
    // Predicated region
    $region50: #{actor_forward.1} parent=1 // pred_check
      _
    $region51: #{actor_forward.1} parent=1 // pred_check_branch
      %93 = sbr.rel (0) target = $region53
    $region52: #{actor_forward.1} parent=1 // pred_region
      %94 = dma.done [#allocation8], 4096
    $region53: #{actor_forward.1} parent=1 // pred_fallthru
      _
    // Predicated region
    $region54: #{actor_forward.1} parent=1 // pred_check
      _
    $region55: #{actor_forward.1} parent=1 // pred_check_branch
      %96 = sbr.rel (0) target = $region57
    $region56: #{actor_forward.1} parent=1 // pred_region
      %97 = dma.done [#allocation8], 2048
    $region57: #{actor_forward.1} parent=1 // pred_fallthru
      _
    %v99 = vld [vmem:[%s0] sm:$0xff]
    %v100 = vpack.c.bf16 %v99, %v99
    %v101 = vld [vmem:[#allocation2] sm:$0xff]
    %v102 = vld [vmem:[#allocation2 + $0x8] sm:$0xff]
    %v103 = vld [vmem:[#allocation4] sm:$0x3]
    %v105 = vlaneseq
    %v106 = vshrl.u32 %v105, 7
    %v107 = vsub.s32 0, %v106
    %v108 = vrot.slane %v103, %v107
    %v109 = vlaneseq
    %v110 = vshrl.u32 %v109, 7
    %v111 = vsub.s32 1, %v110
    %v112 = vrot.slane %v103, %v111
    %v117 = vunpack.c.l.b16 %v101
    %v118 = vunpack.c.h.b16 %v101
    %v119 = vunpack.c.l.b16 %v102
    %v120 = vunpack.c.h.b16 %v102
    %v121 = vpack.c.b16 %v119, %v117
    %v122 = vpack.c.b16 %v120, %v118
    %vm125 = vcmask 130048
    %v127 = vsel %vm125, %v100, 0
    %129 = vmatprep.subr.bf16.mxu0 %v122
    %130 = vmatpush1.bf16.msra.mxu0 %v121
    %131 = vmatprep.subr.bf16.mxu0 0
    %132 = vmatpush1.bf16.msra.mxu0 0
    %133 = vmatprep.subr.bf16.mxu0 0
    %134 = vmatpush1.bf16.msra.mxu0 0
    %135 = vmatprep.subr.bf16.mxu0 0
    %136 = vmatpush1.bf16.msra.mxu0 0
    %137 = vmatprep.subr.bf16.mxu0 0
    %138 = vmatpush1.bf16.msra.mxu0 0
    %139 = vmatprep.subr.bf16.mxu0 0
    %140 = vmatpush1.bf16.msra.mxu0 0
    %141 = vmatprep.subr.bf16.mxu0 0
    %142 = vmatpush1.bf16.msra.mxu0 0
    %143 = vmatprep.subr.bf16.mxu0 0
    %144 = vmatpush1.bf16.msra.mxu0 0
    %145 = vmatprep.subr.bf16.mxu0 0
    %146 = vmatpush1.bf16.msra.mxu0 0
    %147 = vmatprep.subr.bf16.mxu0 0
    %148 = vmatpush1.bf16.msra.mxu0 0
    %149 = vmatprep.subr.bf16.mxu0 0
    %150 = vmatpush1.bf16.msra.mxu0 0
    %151 = vmatprep.subr.bf16.mxu0 0
    %152 = vmatpush1.bf16.msra.mxu0 0
    %153 = vmatprep.subr.bf16.mxu0 0
    %154 = vmatpush1.bf16.msra.mxu0 0
    %155 = vmatprep.subr.bf16.mxu0 0
    %156 = vmatpush1.bf16.msra.mxu0 0
    %157 = vmatprep.subr.bf16.mxu0 0
    %158 = vmatpush1.bf16.msra.mxu0 0
    %159 = vmatprep.subr.bf16.mxu0 0
    %160 = vmatpush1.bf16.msra.mxu0 0
    %161 = vmatprep.mubr.bf16.mxu0 0
    %162 = vmatmul.mubr.bf16.gmra.mrb[0].mxu0 %v127
    %v163 = vpop.f32.mrb[0].mxu0
    %v164 = vadd.f32 %v108, %v163
    %v165 = vpop.f32.mrb[0].mxu0
    %v166 = vadd.f32 %v112, %v165
    %v167 = vpop.f32.mrb[0].mxu0
    %v168 = vpop.f32.mrb[0].mxu0
    %169 = vdwg.mxu0
    %v170 = vmax.f32 %v164, 0.0
    %v171 = vmax.f32 %v166, 0.0
    %v172 = vpack.c.bf16 %v170, %v170
    %v173 = vpack.c.bf16 %v171, %v171
    %v174 = vld [vmem:[#allocation6] sm:$0xff]
    %v175 = vld [vmem:[#allocation6 + $0x8] sm:$0xff]
    %v176 = vld [vmem:[#allocation6 + $0x10] sm:$0xff]
    %v177 = vld [vmem:[#allocation6 + $0x18] sm:$0xff]
    %v178 = vld [vmem:[#allocation6 + $0x20] sm:$0xff]
    %v179 = vld [vmem:[#allocation6 + $0x28] sm:$0xff]
    %v180 = vld [vmem:[#allocation6 + $0x30] sm:$0xff]
    %v181 = vld [vmem:[#allocation6 + $0x38] sm:$0xff]
    %v182 = vld [vmem:[#allocation6 + $0x40] sm:$0xff]
    %v183 = vld [vmem:[#allocation6 + $0x48] sm:$0xff]
    %v184 = vld [vmem:[#allocation6 + $0x50] sm:$0xff]
    %v185 = vld [vmem:[#allocation6 + $0x58] sm:$0xff]
    %v186 = vld [vmem:[#allocation6 + $0x60] sm:$0xff]
    %v187 = vld [vmem:[#allocation6 + $0x68] sm:$0xff]
    %v188 = vld [vmem:[#allocation6 + $0x70] sm:$0xff]
    %v189 = vld [vmem:[#allocation6 + $0x78] sm:$0xff]
    %v190 = vld [vmem:[#allocation6 + $0x80] sm:$0xff]
    %v191 = vld [vmem:[#allocation6 + $0x88] sm:$0xff]
    %v192 = vld [vmem:[#allocation6 + $0x90] sm:$0xff]
    %v193 = vld [vmem:[#allocation6 + $0x98] sm:$0xff]
    %v194 = vld [vmem:[#allocation6 + $0xa0] sm:$0xff]
    %v195 = vld [vmem:[#allocation6 + $0xa8] sm:$0xff]
    %v196 = vld [vmem:[#allocation6 + $0xb0] sm:$0xff]
    %v197 = vld [vmem:[#allocation6 + $0xb8] sm:$0xff]
    %v198 = vld [vmem:[#allocation6 + $0xc0] sm:$0xff]
    %v199 = vld [vmem:[#allocation6 + $0xc8] sm:$0xff]
    %v200 = vld [vmem:[#allocation6 + $0xd0] sm:$0xff]
    %v201 = vld [vmem:[#allocation6 + $0xd8] sm:$0xff]
    %v202 = vld [vmem:[#allocation6 + $0xe0] sm:$0xff]
    %v203 = vld [vmem:[#allocation6 + $0xe8] sm:$0xff]
    %v204 = vld [vmem:[#allocation6 + $0xf0] sm:$0xff]
    %v205 = vld [vmem:[#allocation6 + $0xf8] sm:$0xff]
    %v206 = vld [vmem:[%s4] sm:$0x3]
    %v208 = vlaneseq
    %v209 = vshrl.u32 %v208, 7
    %v210 = vsub.s32 0, %v209
    %v211 = vrot.slane %v206, %v210
    %v212 = vlaneseq
    %v213 = vshrl.u32 %v212, 7
    %v214 = vsub.s32 1, %v213
    %v215 = vrot.slane %v206, %v214
    %v250 = vunpack.c.l.b16 %v174
    %v251 = vunpack.c.h.b16 %v174
    %v252 = vunpack.c.l.b16 %v175
    %v253 = vunpack.c.h.b16 %v175
    %v254 = vunpack.c.l.b16 %v176
    %v255 = vunpack.c.h.b16 %v176
    %v256 = vunpack.c.l.b16 %v177
    %v257 = vunpack.c.h.b16 %v177
    %v258 = vunpack.c.l.b16 %v178
    %v259 = vunpack.c.h.b16 %v178
    %v260 = vunpack.c.l.b16 %v179
    %v261 = vunpack.c.h.b16 %v179
    %v262 = vunpack.c.l.b16 %v180
    %v263 = vunpack.c.h.b16 %v180
    %v264 = vunpack.c.l.b16 %v181
    %v265 = vunpack.c.h.b16 %v181
    %v266 = vunpack.c.l.b16 %v182
    %v267 = vunpack.c.h.b16 %v182
    %v268 = vunpack.c.l.b16 %v183
    %v269 = vunpack.c.h.b16 %v183
    %v270 = vunpack.c.l.b16 %v184
    %v271 = vunpack.c.h.b16 %v184
    %v272 = vunpack.c.l.b16 %v185
    %v273 = vunpack.c.h.b16 %v185
    %v274 = vunpack.c.l.b16 %v186
    %v275 = vunpack.c.h.b16 %v186
    %v276 = vunpack.c.l.b16 %v187
    %v277 = vunpack.c.h.b16 %v187
    %v278 = vunpack.c.l.b16 %v188
    %v279 = vunpack.c.h.b16 %v188
    %v280 = vunpack.c.l.b16 %v189
    %v281 = vunpack.c.h.b16 %v189
    %v282 = vunpack.c.l.b16 %v190
    %v283 = vunpack.c.h.b16 %v190
    %v284 = vunpack.c.l.b16 %v191
    %v285 = vunpack.c.h.b16 %v191
    %v286 = vunpack.c.l.b16 %v192
    %v287 = vunpack.c.h.b16 %v192
    %v288 = vunpack.c.l.b16 %v193
    %v289 = vunpack.c.h.b16 %v193
    %v290 = vunpack.c.l.b16 %v194
    %v291 = vunpack.c.h.b16 %v194
    %v292 = vunpack.c.l.b16 %v195
    %v293 = vunpack.c.h.b16 %v195
    %v294 = vunpack.c.l.b16 %v196
    %v295 = vunpack.c.h.b16 %v196
    %v296 = vunpack.c.l.b16 %v197
    %v297 = vunpack.c.h.b16 %v197
    %v298 = vunpack.c.l.b16 %v198
    %v299 = vunpack.c.h.b16 %v198
    %v300 = vunpack.c.l.b16 %v199
    %v301 = vunpack.c.h.b16 %v199
    %v302 = vunpack.c.l.b16 %v200
    %v303 = vunpack.c.h.b16 %v200
    %v304 = vunpack.c.l.b16 %v201
    %v305 = vunpack.c.h.b16 %v201
    %v306 = vunpack.c.l.b16 %v202
    %v307 = vunpack.c.h.b16 %v202
    %v308 = vunpack.c.l.b16 %v203
    %v309 = vunpack.c.h.b16 %v203
    %v310 = vunpack.c.l.b16 %v204
    %v311 = vunpack.c.h.b16 %v204
    %v312 = vunpack.c.l.b16 %v205
    %v313 = vunpack.c.h.b16 %v205
    %v314 = vpack.c.b16 %v252, %v250
    %v315 = vpack.c.b16 %v253, %v251
    %v316 = vpack.c.b16 %v256, %v254
    %v317 = vpack.c.b16 %v257, %v255
    %v318 = vpack.c.b16 %v260, %v258
    %v319 = vpack.c.b16 %v261, %v259
    %v320 = vpack.c.b16 %v264, %v262
    %v321 = vpack.c.b16 %v265, %v263
    %v322 = vpack.c.b16 %v268, %v266
    %v323 = vpack.c.b16 %v269, %v267
    %v324 = vpack.c.b16 %v272, %v270
    %v325 = vpack.c.b16 %v273, %v271
    %v326 = vpack.c.b16 %v276, %v274
    %v327 = vpack.c.b16 %v277, %v275
    %v328 = vpack.c.b16 %v280, %v278
    %v329 = vpack.c.b16 %v281, %v279
    %v330 = vpack.c.b16 %v284, %v282
    %v331 = vpack.c.b16 %v285, %v283
    %v332 = vpack.c.b16 %v288, %v286
    %v333 = vpack.c.b16 %v289, %v287
    %v334 = vpack.c.b16 %v292, %v290
    %v335 = vpack.c.b16 %v293, %v291
    %v336 = vpack.c.b16 %v296, %v294
    %v337 = vpack.c.b16 %v297, %v295
    %v338 = vpack.c.b16 %v300, %v298
    %v339 = vpack.c.b16 %v301, %v299
    %v340 = vpack.c.b16 %v304, %v302
    %v341 = vpack.c.b16 %v305, %v303
    %v342 = vpack.c.b16 %v308, %v306
    %v343 = vpack.c.b16 %v309, %v307
    %v344 = vpack.c.b16 %v312, %v310
    %v345 = vpack.c.b16 %v313, %v311
    %378 = vmatprep.subr.bf16.mxu0 %v315
    %379 = vmatpush1.bf16.msra.mxu0 %v314
    %380 = vmatprep.subr.bf16.mxu0 %v317
    %381 = vmatpush1.bf16.msra.mxu0 %v316
    %382 = vmatprep.subr.bf16.mxu0 %v319
    %383 = vmatpush1.bf16.msra.mxu0 %v318
    %384 = vmatprep.subr.bf16.mxu0 %v321
    %385 = vmatpush1.bf16.msra.mxu0 %v320
    %386 = vmatprep.subr.bf16.mxu0 %v323
    %387 = vmatpush1.bf16.msra.mxu0 %v322
    %388 = vmatprep.subr.bf16.mxu0 %v325
    %389 = vmatpush1.bf16.msra.mxu0 %v324
    %390 = vmatprep.subr.bf16.mxu0 %v327
    %391 = vmatpush1.bf16.msra.mxu0 %v326
    %392 = vmatprep.subr.bf16.mxu0 %v329
    %393 = vmatpush1.bf16.msra.mxu0 %v328
    %394 = vmatprep.subr.bf16.mxu0 %v331
    %395 = vmatpush1.bf16.msra.mxu0 %v330
    %396 = vmatprep.subr.bf16.mxu0 %v333
    %397 = vmatpush1.bf16.msra.mxu0 %v332
    %398 = vmatprep.subr.bf16.mxu0 %v335
    %399 = vmatpush1.bf16.msra.mxu0 %v334
    %400 = vmatprep.subr.bf16.mxu0 %v337
    %401 = vmatpush1.bf16.msra.mxu0 %v336
    %402 = vmatprep.subr.bf16.mxu0 %v339
    %403 = vmatpush1.bf16.msra.mxu0 %v338
    %404 = vmatprep.subr.bf16.mxu0 %v341
    %405 = vmatpush1.bf16.msra.mxu0 %v340
    %406 = vmatprep.subr.bf16.mxu0 %v343
    %407 = vmatpush1.bf16.msra.mxu0 %v342
    %408 = vmatprep.subr.bf16.mxu0 %v345
    %409 = vmatpush1.bf16.msra.mxu0 %v344
    %410 = vmatprep.mubr.bf16.mxu0 %v173
    %411 = vmatmul.mubr.bf16.gmra.mrb[0].mxu0 %v172
    %v412 = vpop.f32.mrb[0].mxu0
    %v413 = vadd.f32 %v211, %v412
    %v414 = vpop.f32.mrb[0].mxu0
    %v415 = vadd.f32 %v215, %v414
    %v416 = vpop.f32.mrb[0].mxu0
    %v417 = vpop.f32.mrb[0].mxu0
    %418 = vdwg.mxu0
    %v419 = vmax.f32 %v413, 0.0
    %v420 = vmax.f32 %v415, 0.0
    %v421 = vpack.c.bf16 %v419, %v419
    %v422 = vpack.c.bf16 %v420, %v420
    %v423 = vld [vmem:[#allocation7] sm:$0xff]
    %v424 = vld [vmem:[#allocation7 + $0x8] sm:$0xff]
    %v425 = vld [vmem:[#allocation7 + $0x10] sm:$0xff]
    %v426 = vld [vmem:[#allocation7 + $0x18] sm:$0xff]
    %v427 = vld [vmem:[#allocation7 + $0x20] sm:$0xff]
    %v428 = vld [vmem:[#allocation7 + $0x28] sm:$0xff]
    %v429 = vld [vmem:[#allocation7 + $0x30] sm:$0xff]
    %v430 = vld [vmem:[#allocation7 + $0x38] sm:$0xff]
    %v431 = vld [vmem:[#allocation7 + $0x40] sm:$0xff]
    %v432 = vld [vmem:[#allocation7 + $0x48] sm:$0xff]
    %v433 = vld [vmem:[#allocation7 + $0x50] sm:$0xff]
    %v434 = vld [vmem:[#allocation7 + $0x58] sm:$0xff]
    %v435 = vld [vmem:[#allocation7 + $0x60] sm:$0xff]
    %v436 = vld [vmem:[#allocation7 + $0x68] sm:$0xff]
    %v437 = vld [vmem:[#allocation7 + $0x70] sm:$0xff]
    %v438 = vld [vmem:[#allocation7 + $0x78] sm:$0xff]
    %v439 = vld [vmem:[#allocation7 + $0x80] sm:$0xff]
    %v440 = vld [vmem:[#allocation7 + $0x88] sm:$0xff]
    %v441 = vld [vmem:[#allocation7 + $0x90] sm:$0xff]
    %v442 = vld [vmem:[#allocation7 + $0x98] sm:$0xff]
    %v443 = vld [vmem:[#allocation7 + $0xa0] sm:$0xff]
    %v444 = vld [vmem:[#allocation7 + $0xa8] sm:$0xff]
    %v445 = vld [vmem:[#allocation7 + $0xb0] sm:$0xff]
    %v446 = vld [vmem:[#allocation7 + $0xb8] sm:$0xff]
    %v447 = vld [vmem:[#allocation7 + $0xc0] sm:$0xff]
    %v448 = vld [vmem:[#allocation7 + $0xc8] sm:$0xff]
    %v449 = vld [vmem:[#allocation7 + $0xd0] sm:$0xff]
    %v450 = vld [vmem:[#allocation7 + $0xd8] sm:$0xff]
    %v451 = vld [vmem:[#allocation7 + $0xe0] sm:$0xff]
    %v452 = vld [vmem:[#allocation7 + $0xe8] sm:$0xff]
    %v453 = vld [vmem:[#allocation7 + $0xf0] sm:$0xff]
    %v454 = vld [vmem:[#allocation7 + $0xf8] sm:$0xff]
    %v455 = vld [vmem:[%s6] sm:$0x3]
    %v457 = vlaneseq
    %v458 = vshrl.u32 %v457, 7
    %v459 = vsub.s32 0, %v458
    %v460 = vrot.slane %v455, %v459
    %v461 = vlaneseq
    %v462 = vshrl.u32 %v461, 7
    %v463 = vsub.s32 1, %v462
    %v464 = vrot.slane %v455, %v463
    %v499 = vunpack.c.l.b16 %v423
    %v500 = vunpack.c.h.b16 %v423
    %v501 = vunpack.c.l.b16 %v424
    %v502 = vunpack.c.h.b16 %v424
    %v503 = vunpack.c.l.b16 %v425
    %v504 = vunpack.c.h.b16 %v425
    %v505 = vunpack.c.l.b16 %v426
    %v506 = vunpack.c.h.b16 %v426
    %v507 = vunpack.c.l.b16 %v427
    %v508 = vunpack.c.h.b16 %v427
    %v509 = vunpack.c.l.b16 %v428
    %v510 = vunpack.c.h.b16 %v428
    %v511 = vunpack.c.l.b16 %v429
    %v512 = vunpack.c.h.b16 %v429
    %v513 = vunpack.c.l.b16 %v430
    %v514 = vunpack.c.h.b16 %v430
    %v515 = vunpack.c.l.b16 %v431
    %v516 = vunpack.c.h.b16 %v431
    %v517 = vunpack.c.l.b16 %v432
    %v518 = vunpack.c.h.b16 %v432
    %v519 = vunpack.c.l.b16 %v433
    %v520 = vunpack.c.h.b16 %v433
    %v521 = vunpack.c.l.b16 %v434
    %v522 = vunpack.c.h.b16 %v434
    %v523 = vunpack.c.l.b16 %v435
    %v524 = vunpack.c.h.b16 %v435
    %v525 = vunpack.c.l.b16 %v436
    %v526 = vunpack.c.h.b16 %v436
    %v527 = vunpack.c.l.b16 %v437
    %v528 = vunpack.c.h.b16 %v437
    %v529 = vunpack.c.l.b16 %v438
    %v530 = vunpack.c.h.b16 %v438
    %v531 = vunpack.c.l.b16 %v439
    %v532 = vunpack.c.h.b16 %v439
    %v533 = vunpack.c.l.b16 %v440
    %v534 = vunpack.c.h.b16 %v440
    %v535 = vunpack.c.l.b16 %v441
    %v536 = vunpack.c.h.b16 %v441
    %v537 = vunpack.c.l.b16 %v442
    %v538 = vunpack.c.h.b16 %v442
    %v539 = vunpack.c.l.b16 %v443
    %v540 = vunpack.c.h.b16 %v443
    %v541 = vunpack.c.l.b16 %v444
    %v542 = vunpack.c.h.b16 %v444
    %v543 = vunpack.c.l.b16 %v445
    %v544 = vunpack.c.h.b16 %v445
    %v545 = vunpack.c.l.b16 %v446
    %v546 = vunpack.c.h.b16 %v446
    %v547 = vunpack.c.l.b16 %v447
    %v548 = vunpack.c.h.b16 %v447
    %v549 = vunpack.c.l.b16 %v448
    %v550 = vunpack.c.h.b16 %v448
    %v551 = vunpack.c.l.b16 %v449
    %v552 = vunpack.c.h.b16 %v449
    %v553 = vunpack.c.l.b16 %v450
    %v554 = vunpack.c.h.b16 %v450
    %v555 = vunpack.c.l.b16 %v451
    %v556 = vunpack.c.h.b16 %v451
    %v557 = vunpack.c.l.b16 %v452
    %v558 = vunpack.c.h.b16 %v452
    %v559 = vunpack.c.l.b16 %v453
    %v560 = vunpack.c.h.b16 %v453
    %v561 = vunpack.c.l.b16 %v454
    %v562 = vunpack.c.h.b16 %v454
    %v563 = vpack.c.b16 %v501, %v499
    %v564 = vpack.c.b16 %v502, %v500
    %v565 = vpack.c.b16 %v505, %v503
    %v566 = vpack.c.b16 %v506, %v504
    %v567 = vpack.c.b16 %v509, %v507
    %v568 = vpack.c.b16 %v510, %v508
    %v569 = vpack.c.b16 %v513, %v511
    %v570 = vpack.c.b16 %v514, %v512
    %v571 = vpack.c.b16 %v517, %v515
    %v572 = vpack.c.b16 %v518, %v516
    %v573 = vpack.c.b16 %v521, %v519
    %v574 = vpack.c.b16 %v522, %v520
    %v575 = vpack.c.b16 %v525, %v523
    %v576 = vpack.c.b16 %v526, %v524
    %v577 = vpack.c.b16 %v529, %v527
    %v578 = vpack.c.b16 %v530, %v528
    %v579 = vpack.c.b16 %v533, %v531
    %v580 = vpack.c.b16 %v534, %v532
    %v581 = vpack.c.b16 %v537, %v535
    %v582 = vpack.c.b16 %v538, %v536
    %v583 = vpack.c.b16 %v541, %v539
    %v584 = vpack.c.b16 %v542, %v540
    %v585 = vpack.c.b16 %v545, %v543
    %v586 = vpack.c.b16 %v546, %v544
    %v587 = vpack.c.b16 %v549, %v547
    %v588 = vpack.c.b16 %v550, %v548
    %v589 = vpack.c.b16 %v553, %v551
    %v590 = vpack.c.b16 %v554, %v552
    %v591 = vpack.c.b16 %v557, %v555
    %v592 = vpack.c.b16 %v558, %v556
    %v593 = vpack.c.b16 %v561, %v559
    %v594 = vpack.c.b16 %v562, %v560
    %627 = vmatprep.subr.bf16.mxu0 %v564
    %628 = vmatpush1.bf16.msra.mxu0 %v563
    %629 = vmatprep.subr.bf16.mxu0 %v566
    %630 = vmatpush1.bf16.msra.mxu0 %v565
    %631 = vmatprep.subr.bf16.mxu0 %v568
    %632 = vmatpush1.bf16.msra.mxu0 %v567
    %633 = vmatprep.subr.bf16.mxu0 %v570
    %634 = vmatpush1.bf16.msra.mxu0 %v569
    %635 = vmatprep.subr.bf16.mxu0 %v572
    %636 = vmatpush1.bf16.msra.mxu0 %v571
    %637 = vmatprep.subr.bf16.mxu0 %v574
    %638 = vmatpush1.bf16.msra.mxu0 %v573
    %639 = vmatprep.subr.bf16.mxu0 %v576
    %640 = vmatpush1.bf16.msra.mxu0 %v575
    %641 = vmatprep.subr.bf16.mxu0 %v578
    %642 = vmatpush1.bf16.msra.mxu0 %v577
    %643 = vmatprep.subr.bf16.mxu0 %v580
    %644 = vmatpush1.bf16.msra.mxu0 %v579
    %645 = vmatprep.subr.bf16.mxu0 %v582
    %646 = vmatpush1.bf16.msra.mxu0 %v581
    %647 = vmatprep.subr.bf16.mxu0 %v584
    %648 = vmatpush1.bf16.msra.mxu0 %v583
    %649 = vmatprep.subr.bf16.mxu0 %v586
    %650 = vmatpush1.bf16.msra.mxu0 %v585
    %651 = vmatprep.subr.bf16.mxu0 %v588
    %652 = vmatpush1.bf16.msra.mxu0 %v587
    %653 = vmatprep.subr.bf16.mxu0 %v590
    %654 = vmatpush1.bf16.msra.mxu0 %v589
    %655 = vmatprep.subr.bf16.mxu0 %v592
    %656 = vmatpush1.bf16.msra.mxu0 %v591
    %657 = vmatprep.subr.bf16.mxu0 %v594
    %658 = vmatpush1.bf16.msra.mxu0 %v593
    %659 = vmatprep.mubr.bf16.mxu0 %v422
    %660 = vmatmul.mubr.bf16.gmra.mrb[0].mxu0 %v421
    %v661 = vpop.f32.mrb[0].mxu0
    %v662 = vadd.f32 %v460, %v661
    %v663 = vpop.f32.mrb[0].mxu0
    %v664 = vadd.f32 %v464, %v663
    %v665 = vpop.f32.mrb[0].mxu0
    %v666 = vpop.f32.mrb[0].mxu0
    %667 = vdwg.mxu0
    %v668 = vmax.f32 %v662, 0.0
    %v669 = vmax.f32 %v664, 0.0
    %v670 = vpack.c.bf16 %v668, %v668
    %v671 = vpack.c.bf16 %v669, %v669
    %v672 = vld [vmem:[#allocation9] sm:$0xf]
    %v673 = vld [vmem:[#allocation9 + $0x4] sm:$0xf]
    %v674 = vld [vmem:[#allocation9 + $0x8] sm:$0xf]
    %v675 = vld [vmem:[#allocation9 + $0xc] sm:$0xf]
    %v676 = vld [vmem:[#allocation9 + $0x10] sm:$0xf]
    %v677 = vld [vmem:[#allocation9 + $0x14] sm:$0xf]
    %v678 = vld [vmem:[#allocation9 + $0x18] sm:$0xf]
    %v679 = vld [vmem:[#allocation9 + $0x1c] sm:$0xf]
    %v680 = vld [vmem:[#allocation9 + $0x20] sm:$0xf]
    %v681 = vld [vmem:[#allocation9 + $0x24] sm:$0xf]
    %v682 = vld [vmem:[#allocation9 + $0x28] sm:$0xf]
    %v683 = vld [vmem:[#allocation9 + $0x2c] sm:$0xf]
    %v684 = vld [vmem:[#allocation9 + $0x30] sm:$0xf]
    %v685 = vld [vmem:[#allocation9 + $0x34] sm:$0xf]
    %v686 = vld [vmem:[#allocation9 + $0x38] sm:$0xf]
    %v687 = vld [vmem:[#allocation9 + $0x3c] sm:$0xf]
    %v688 = vld [vmem:[#allocation9 + $0x40] sm:$0xf]
    %v689 = vld [vmem:[#allocation9 + $0x44] sm:$0xf]
    %v690 = vld [vmem:[#allocation9 + $0x48] sm:$0xf]
    %v691 = vld [vmem:[#allocation9 + $0x4c] sm:$0xf]
    %v692 = vld [vmem:[#allocation9 + $0x50] sm:$0xf]
    %v693 = vld [vmem:[#allocation9 + $0x54] sm:$0xf]
    %v694 = vld [vmem:[#allocation9 + $0x58] sm:$0xf]
    %v695 = vld [vmem:[#allocation9 + $0x5c] sm:$0xf]
    %v696 = vld [vmem:[#allocation9 + $0x60] sm:$0xf]
    %v697 = vld [vmem:[#allocation9 + $0x64] sm:$0xf]
    %v698 = vld [vmem:[#allocation9 + $0x68] sm:$0xf]
    %v699 = vld [vmem:[#allocation9 + $0x6c] sm:$0xf]
    %v700 = vld [vmem:[#allocation9 + $0x70] sm:$0xf]
    %v701 = vld [vmem:[#allocation9 + $0x74] sm:$0xf]
    %v702 = vld [vmem:[#allocation9 + $0x78] sm:$0xf]
    %v703 = vld [vmem:[#allocation9 + $0x7c] sm:$0xf]
    %v704 = vld [vmem:[%s8] sm:$0x1]
    %v706 = vlaneseq
    %v707 = vshrl.u32 %v706, 7
    %v708 = vsub.s32 0, %v707
    %v709 = vrot.slane %v704, %v708
    %v743 = vunpack.c.l.b16 %v672
    %v744 = vunpack.c.l.b16 %v673
    %v745 = vunpack.c.l.b16 %v674
    %v746 = vunpack.c.l.b16 %v675
    %v747 = vunpack.c.l.b16 %v676
    %v748 = vunpack.c.l.b16 %v677
    %v749 = vunpack.c.l.b16 %v678
    %v750 = vunpack.c.l.b16 %v679
    %v751 = vunpack.c.l.b16 %v680
    %v752 = vunpack.c.l.b16 %v681
    %v753 = vunpack.c.l.b16 %v682
    %v754 = vunpack.c.l.b16 %v683
    %v755 = vunpack.c.l.b16 %v684
    %v756 = vunpack.c.l.b16 %v685
    %v757 = vunpack.c.l.b16 %v686
    %v758 = vunpack.c.l.b16 %v687
    %v759 = vunpack.c.l.b16 %v688
    %v760 = vunpack.c.l.b16 %v689
    %v761 = vunpack.c.l.b16 %v690
    %v762 = vunpack.c.l.b16 %v691
    %v763 = vunpack.c.l.b16 %v692
    %v764 = vunpack.c.l.b16 %v693
    %v765 = vunpack.c.l.b16 %v694
    %v766 = vunpack.c.l.b16 %v695
    %v767 = vunpack.c.l.b16 %v696
    %v768 = vunpack.c.l.b16 %v697
    %v769 = vunpack.c.l.b16 %v698
    %v770 = vunpack.c.l.b16 %v699
    %v771 = vunpack.c.l.b16 %v700
    %v772 = vunpack.c.l.b16 %v701
    %v773 = vunpack.c.l.b16 %v702
    %v774 = vunpack.c.l.b16 %v703
    %v775 = vpack.c.b16 %v744, %v743
    %v776 = vpack.c.b16 %v746, %v745
    %v777 = vpack.c.b16 %v748, %v747
    %v778 = vpack.c.b16 %v750, %v749
    %v779 = vpack.c.b16 %v752, %v751
    %v780 = vpack.c.b16 %v754, %v753
    %v781 = vpack.c.b16 %v756, %v755
    %v782 = vpack.c.b16 %v758, %v757
    %v783 = vpack.c.b16 %v760, %v759
    %v784 = vpack.c.b16 %v762, %v761
    %v785 = vpack.c.b16 %v764, %v763
    %v786 = vpack.c.b16 %v766, %v765
    %v787 = vpack.c.b16 %v768, %v767
    %v788 = vpack.c.b16 %v770, %v769
    %v789 = vpack.c.b16 %v772, %v771
    %v790 = vpack.c.b16 %v774, %v773
    %807 = vmatprep.subr.bf16.mxu0 0
    %808 = vmatpush1.bf16.msra.mxu0 %v775
    %809 = vmatprep.subr.bf16.mxu0 0
    %810 = vmatpush1.bf16.msra.mxu0 %v776
    %811 = vmatprep.subr.bf16.mxu0 0
    %812 = vmatpush1.bf16.msra.mxu0 %v777
    %813 = vmatprep.subr.bf16.mxu0 0
    %814 = vmatpush1.bf16.msra.mxu0 %v778
    %815 = vmatprep.subr.bf16.mxu0 0
    %816 = vmatpush1.bf16.msra.mxu0 %v779
    %817 = vmatprep.subr.bf16.mxu0 0
    %818 = vmatpush1.bf16.msra.mxu0 %v780
    %819 = vmatprep.subr.bf16.mxu0 0
    %820 = vmatpush1.bf16.msra.mxu0 %v781
    %821 = vmatprep.subr.bf16.mxu0 0
    %822 = vmatpush1.bf16.msra.mxu0 %v782
    %823 = vmatprep.subr.bf16.mxu0 0
    %824 = vmatpush1.bf16.msra.mxu0 %v783
    %825 = vmatprep.subr.bf16.mxu0 0
    %826 = vmatpush1.bf16.msra.mxu0 %v784
    %827 = vmatprep.subr.bf16.mxu0 0
    %828 = vmatpush1.bf16.msra.mxu0 %v785
    %829 = vmatprep.subr.bf16.mxu0 0
    %830 = vmatpush1.bf16.msra.mxu0 %v786
    %831 = vmatprep.subr.bf16.mxu0 0
    %832 = vmatpush1.bf16.msra.mxu0 %v787
    %833 = vmatprep.subr.bf16.mxu0 0
    %834 = vmatpush1.bf16.msra.mxu0 %v788
    %835 = vmatprep.subr.bf16.mxu0 0
    %836 = vmatpush1.bf16.msra.mxu0 %v789
    %837 = vmatprep.subr.bf16.mxu0 0
    %838 = vmatpush1.bf16.msra.mxu0 %v790
    %839 = vmatprep.mubr.bf16.mxu0 %v671
    %840 = vmatmul.mubr.bf16.gmra.mrb[0].mxu0 %v670
    %v841 = vpop.f32.mrb[0].mxu0
    %v842 = vadd.f32 %v709, %v841
    %v843 = vpop.f32.mrb[0].mxu0
    %v844 = vpop.f32.mrb[0].mxu0
    %v845 = vpop.f32.mrb[0].mxu0
    %846 = vdwg.mxu0
    %v847 = vlaneseq
    %v848 = vand.u32 %v847, 127
    %v849 = vmax.f32 %v842, -2.0
    %v850 = vmin.f32 %v849, 2.0
    %vm851 = vcmp.lt.s32.totalorder %v848, 1
    %v852 = vsel %vm851, %v842, %v850
    %853 = vst [vmem:[%s9] sm:$0xff] %v852
    // Predicated region
    $region58: #{actor_forward.1} parent=1 // pred_check
      _
    $region59: #{actor_forward.1} parent=1 // pred_check_branch
      %855 = sbr.rel (0) target = $region61
    $region60: #{actor_forward.1} parent=1 // pred_region
      _
    $region61: #{actor_forward.1} parent=1 // pred_fallthru
      _
    // Predicated region
    $region62: #{actor_forward.1} parent=1 // pred_check
      _
    $region63: #{actor_forward.1} parent=1 // pred_check_branch
      %857 = sbr.rel (0) target = $region65
    $region64: #{actor_forward.1} parent=1 // pred_region
      _
    $region65: #{actor_forward.1} parent=1 // pred_fallthru
      _
    %858 = vsyncpa [#allocation3], 1
    %859 = vsyncpa [#allocation5], 1
    %860 = vsyncpa [#allocation8], 1

</llo_original>
